<compile_context>
chip_gen: v7x
topology: tpu7x:2x2x1
jax: 0.10.0
libtpu: 0.0.40
codegen_flags: <defaults>
</compile_context>

<pallas_src>
import functools

import jax
import jax.numpy as jnp
from jax.experimental import pallas as pl
from jax.experimental.pallas import tpu as pltpu

HIDDEN = 256            # self.shared_dim
OUT_LANES = 128         # lane-dense output slab: logits in lanes [0, A), value in lane A
TILE_N_MAX = 2048       # rows per grid step (multiple of 16; ~15 MiB VMEM working set)
MIN_GRID_STEPS = 4      # keep both v7x TensorCores busy via ("parallel",) grid axis
VMEM_LIMIT_BYTES = 40 * 1024 * 1024   # safe on v5e/v6e (128 MiB) and v7x (64 MiB/TC)


def _round_up(x, m):
    return ((x + m - 1) // m) * m


def _select_tile_n(n):
    """Rows per grid step: large enough to amortize ~0.35us/step pipeline
    overhead, small enough to keep >= MIN_GRID_STEPS steps and fit VMEM.
    Always a multiple of 16 (bf16 minimum sublane tile)."""
    if n <= MIN_GRID_STEPS * 16:
        return _round_up(max(n, 16), 16)                  # tiny batch: one small tile
    tile = _round_up(pl.cdiv(n, MIN_GRID_STEPS), 16)
    return min(tile, TILE_N_MAX)


def _ff_kernel(x_ref,
               w1_ref, b1_ref,          # shared layer 1   (D, 256)
               w2_ref, b2_ref,          # shared layer 2   (256, 256)
               wh_ref, bh_ref,          # fused head layer 1  (256, 512) = [wp1 | wv1]
               wo_ref, bo_ref,          # fused output proj   (512, 128)
               out_ref,                 # (TILE_N, 128) f32 slab
               *, action_size, hidden_dtype):

    def dense_relu(x, w_ref, b_ref):
        # MXU accumulates in f32 internally; the epilogue (bias + ReLU) runs in
        # `hidden_dtype`: bf16 on v6e/v7x (halves VALU work), f32 on v5e.
        h = jnp.dot(x, w_ref[...], preferred_element_type=hidden_dtype) + b_ref[...]
        return jnp.maximum(h, 0).astype(jnp.bfloat16)

    h1 = dense_relu(x_ref[...], w1_ref, b1_ref)          # shared layer 1
    feat = dense_relu(h1, w2_ref, b2_ref)                # shared layer 2
    hh = dense_relu(feat, wh_ref, bh_ref)                # fused pi/value head layer 1

    # fused, lane-padded final projection (softmax math stays f32):
    #   lanes [0, A)   : pi logits  (= p1 @ wp2 + bp2)
    #   lane  A        : value      (= v1 @ wv2 + bv2)
    #   lanes (A, 128) : zero padding
    y = jnp.dot(hh, wo_ref[...], preferred_element_type=jnp.float32) + bo_ref[...]

    col = jax.lax.broadcasted_iota(jnp.int32, y.shape, 1)
    is_logit = col < action_size                          # computed once, reused twice
    logits = jnp.where(is_logit, y, -1e30)                # mask padded lanes out of softmax
    m = jnp.max(logits, axis=-1, keepdims=True)
    e = jnp.exp(logits - m)
    inv_denom = pl.reciprocal(jnp.sum(e, axis=-1, keepdims=True), approx=True)
    pi = e * inv_denom

    # single unmasked lane-dense store: pi in lanes < A, raw y (value) elsewhere
    out_ref[...] = jnp.where(is_logit, pi, y)


def categorical_ff_forward(observation, params):
    """observation: (T, B, D) float32.
    Returns (pi [T,B,A], value [T,B], rnn_state [1,B,1])."""
    T, B, D = observation.shape
    N = T * B
    A = params["wp2"].shape[1]
    assert A + 1 <= OUT_LANES, "action_size + value lane must fit in one 128-lane slab"

    tile_n = _select_tile_n(N)
    n_pad = _round_up(N, tile_n)
    grid = (n_pad // tile_n,)

    # v5e (and older) has no bf16 VALU -> keep hidden-layer epilogues in f32 there.
    kind = jax.devices()[0].device_kind.lower()
    bf16_epilogue = any(tag in kind for tag in ("v6", "v7", "7x"))
    hidden_dtype = jnp.bfloat16 if bf16_epilogue else jnp.float32

    # --- x: (n_pad, D) bf16. Row pad only (cheap); obs dim stays un-inflated. ---
    x = observation.reshape(N, D)
    if n_pad != N:
        x = jnp.pad(x, ((0, n_pad - N), (0, 0)))
    x = x.astype(jnp.bfloat16)

    # --- pack weights (bf16 for the MXU); hidden biases match the epilogue dtype ---
    w1 = params["w1"].astype(jnp.bfloat16)
    w2 = params["w2"].astype(jnp.bfloat16)
    wh = jnp.concatenate([params["wp1"], params["wv1"]], axis=1).astype(jnp.bfloat16)
    b1 = params["b1"].astype(hidden_dtype)
    b2 = params["b2"].astype(hidden_dtype)
    bh = jnp.concatenate([params["bp1"], params["bv1"]], axis=1).astype(hidden_dtype)

    wo = jnp.zeros((2 * HIDDEN, OUT_LANES), jnp.float32)
    wo = wo.at[:HIDDEN, :A].set(params["wp2"])            # logits from p1 half
    wo = wo.at[HIDDEN:, A:A + 1].set(params["wv2"])       # value from v1 half
    wo = wo.astype(jnp.bfloat16)
    bo = jnp.zeros((1, OUT_LANES), jnp.float32)
    bo = bo.at[:, :A].set(params["bp2"])
    bo = bo.at[:, A:A + 1].set(params["bv2"])

    def _const(shape):      # weight/bias blocks: full array, VMEM-resident across grid
        return pl.BlockSpec(shape, lambda i: (0, 0))

    in_specs = [
        pl.BlockSpec((tile_n, D), lambda i: (i, 0)),           # x tile (last dim = full D)
        _const((D, HIDDEN)), _const((1, HIDDEN)),              # w1, b1
        _const((HIDDEN, HIDDEN)), _const((1, HIDDEN)),         # w2, b2
        _const((HIDDEN, 2 * HIDDEN)), _const((1, 2 * HIDDEN)), # wh, bh
        _const((2 * HIDDEN, OUT_LANES)), _const((1, OUT_LANES)),  # wo, bo
    ]
    out_spec = pl.BlockSpec((tile_n, OUT_LANES), lambda i: (i, 0))

    kernel = functools.partial(_ff_kernel, action_size=A, hidden_dtype=hidden_dtype)

    out = pl.pallas_call(
        kernel,
        out_shape=jax.ShapeDtypeStruct((n_pad, OUT_LANES), jnp.float32),
        grid=grid,
        in_specs=in_specs,
        out_specs=out_spec,
        compiler_params=pltpu.CompilerParams(
            dimension_semantics=("parallel",),
            vmem_limit_bytes=VMEM_LIMIT_BYTES),
    )(x, w1, b1, w2, b2, wh, bh, wo, bo)

    pi = out[:N, :A].reshape(T, B, A)
    value = out[:N, A].reshape(T, B)            # squeeze(-1) then restore (T, B)
    rnn_state = jnp.zeros((1, B, 1), jnp.float32)
    return pi, value, rnn_state


def init_params(key, obs_dim, action_size):
    """Deterministic synthetic parameters matching the module's layer shapes.
    Biases stored as (1, out) rows for clean broadcasting inside the kernel."""
    ks = jax.random.split(key, 8)

    def lin(k, n_in, n_out):
        scale = 1.0 / jnp.sqrt(jnp.float32(n_in))
        w = jax.random.uniform(k, (n_in, n_out), jnp.float32, -scale, scale)
        b = jax.random.uniform(jax.random.fold_in(k, 1), (1, n_out), jnp.float32,
                               -scale, scale)
        return w, b

    w1, b1 = lin(ks[0], obs_dim, HIDDEN)
    w2, b2 = lin(ks[1], HIDDEN, HIDDEN)
    wp1, bp1 = lin(ks[2], HIDDEN, HIDDEN)
    wp2, bp2 = lin(ks[3], HIDDEN, action_size)
    wv1, bv1 = lin(ks[4], HIDDEN, HIDDEN)
    wv2, bv2 = lin(ks[5], HIDDEN, 1)
    return dict(w1=w1, b1=b1, w2=w2, b2=b2,
                wp1=wp1, bp1=bp1, wp2=wp2, bp2=bp2,
                wv1=wv1, bv1=bv1, wv2=wv2, bv2=bv2)


def _reference_forward(observation, params):
    """Pure-JAX f32 reference of the PyTorch forward (loose sanity check)."""
    T, B, D = observation.shape
    x = observation.reshape(T * B, D)
    h = jax.nn.relu(x @ params["w1"] + params["b1"])
    feat = jax.nn.relu(h @ params["w2"] + params["b2"])
    p1 = jax.nn.relu(feat @ params["wp1"] + params["bp1"])
    logits = p1 @ params["wp2"] + params["bp2"]
    pi = jax.nn.softmax(logits, axis=-1).reshape(T, B, -1)
    v1 = jax.nn.relu(feat @ params["wv1"] + params["bv1"])
    value = (v1 @ params["wv2"] + params["bv2"])[:, 0].reshape(T, B)
    return pi, value


if __name__ == "__main__":
    key = jax.random.PRNGKey(0)
    k_obs, k_param = jax.random.split(key)

    T, B, D, A = 2, 4, 16, 6               # small shapes: (T, B, obs_dim), action_size
    observation = jax.random.normal(k_obs, (T, B, D), jnp.float32)
    params = init_params(k_param, D, A)

    pi, value, rnn_state = categorical_ff_forward(observation, params)
    jax.block_until_ready((pi, value, rnn_state))

    # sanity checks
    assert pi.shape == (T, B, A)
    assert value.shape == (T, B)
    assert rnn_state.shape == (1, B, 1)
    assert bool(jnp.all(jnp.isfinite(pi))) and bool(jnp.all(jnp.isfinite(value)))
    assert bool(jnp.all(jnp.abs(jnp.sum(pi, axis=-1) - 1.0) < 1e-2))

    # loose agreement with the f32 reference (kernel uses bf16 MXU inputs/activations)
    pi_ref, value_ref = _reference_forward(observation, params)
    assert bool(jnp.max(jnp.abs(pi - pi_ref)) < 5e-2)
    assert bool(jnp.max(jnp.abs(value - value_ref)) < 5e-2)

    print("KERNEL_OK")
</pallas_src>

<mosaic_0001>
module attributes {stable_mosaic.version = 11 : i64} {
  func.func @_ff_kernel(%arg0: i32, %arg1: memref<16x16xbf16, #tpu.memory_space<vmem>>, %arg2: memref<16x256xbf16, #tpu.memory_space<vmem>>, %arg3: memref<1x256xf32, #tpu.memory_space<vmem>>, %arg4: memref<256x256xbf16, #tpu.memory_space<vmem>>, %arg5: memref<1x256xf32, #tpu.memory_space<vmem>>, %arg6: memref<256x512xbf16, #tpu.memory_space<vmem>>, %arg7: memref<1x512xf32, #tpu.memory_space<vmem>>, %arg8: memref<512x128xbf16, #tpu.memory_space<vmem>>, %arg9: memref<1x128xf32, #tpu.memory_space<vmem>>, %arg10: memref<16x128xf32, #tpu.memory_space<vmem>>) attributes {dimension_semantics = [#tpu.dimension_semantics<parallel>], iteration_bounds = array<i64: 1>, scalar_prefetch = 0 : i64, scratch_operands = 0 : i64, tpu.core_type = #tpu.core_type<tc>, window_params = [{transform_indices = @transform_0, window_bounds = array<i64: 16, 16>}, {pipeline_mode = #tpu.pipeline_mode<synchronous>, transform_indices = @transform_1, window_bounds = array<i64: 16, 256>}, {pipeline_mode = #tpu.pipeline_mode<synchronous>, transform_indices = @transform_2, window_bounds = array<i64: 1, 256>}, {pipeline_mode = #tpu.pipeline_mode<synchronous>, transform_indices = @transform_3, window_bounds = array<i64: 256, 256>}, {pipeline_mode = #tpu.pipeline_mode<synchronous>, transform_indices = @transform_4, window_bounds = array<i64: 1, 256>}, {pipeline_mode = #tpu.pipeline_mode<synchronous>, transform_indices = @transform_5, window_bounds = array<i64: 256, 512>}, {pipeline_mode = #tpu.pipeline_mode<synchronous>, transform_indices = @transform_6, window_bounds = array<i64: 1, 512>}, {pipeline_mode = #tpu.pipeline_mode<synchronous>, transform_indices = @transform_7, window_bounds = array<i64: 512, 128>}, {pipeline_mode = #tpu.pipeline_mode<synchronous>, transform_indices = @transform_8, window_bounds = array<i64: 1, 128>}, {transform_indices = @transform_9, window_bounds = array<i64: 16, 128>}]} {
    %c0 = arith.constant 0 : index
    %c0_0 = arith.constant 0 : index
    %0 = vector.load %arg1[%c0, %c0_0] : memref<16x16xbf16, #tpu.memory_space<vmem>>, vector<16x16xbf16>
    %c0_1 = arith.constant 0 : index
    %c0_2 = arith.constant 0 : index
    %1 = vector.load %arg2[%c0_1, %c0_2] : memref<16x256xbf16, #tpu.memory_space<vmem>>, vector<16x256xbf16>
    %cst = arith.constant dense<0.000000e+00> : vector<16x256xf32>
    %2 = tpu.matmul %0, %1, %cst {dimension_numbers = #tpu.dot_dimension_numbers<[1], [0], [0], [1], [0, 0, 1, 1], [], []>} : vector<16x16xbf16>, vector<16x256xbf16>, vector<16x256xf32> -> vector<16x256xf32>
    %c0_3 = arith.constant 0 : index
    %c0_4 = arith.constant 0 : index
    %3 = vector.load %arg3[%c0_3, %c0_4] : memref<1x256xf32, #tpu.memory_space<vmem>>, vector<1x256xf32>
    %4 = vector.broadcast %3 : vector<1x256xf32> to vector<16x256xf32>
    %5 = arith.addf %2, %4 : vector<16x256xf32>
    %cst_5 = arith.constant 0.000000e+00 : f32
    %6 = vector.broadcast %cst_5 : f32 to vector<16x256xf32>
    %7 = arith.maximumf %5, %6 : vector<16x256xf32>
    %8 = arith.truncf %7 : vector<16x256xf32> to vector<16x256xbf16>
    %c0_6 = arith.constant 0 : index
    %c0_7 = arith.constant 0 : index
    %9 = vector.load %arg4[%c0_6, %c0_7] : memref<256x256xbf16, #tpu.memory_space<vmem>>, vector<256x256xbf16>
    %cst_8 = arith.constant dense<0.000000e+00> : vector<16x256xf32>
    %10 = tpu.matmul %8, %9, %cst_8 {dimension_numbers = #tpu.dot_dimension_numbers<[1], [0], [0], [1], [0, 0, 1, 1], [], []>} : vector<16x256xbf16>, vector<256x256xbf16>, vector<16x256xf32> -> vector<16x256xf32>
    %c0_9 = arith.constant 0 : index
    %c0_10 = arith.constant 0 : index
    %11 = vector.load %arg5[%c0_9, %c0_10] : memref<1x256xf32, #tpu.memory_space<vmem>>, vector<1x256xf32>
    %12 = vector.broadcast %11 : vector<1x256xf32> to vector<16x256xf32>
    %13 = arith.addf %10, %12 : vector<16x256xf32>
    %cst_11 = arith.constant 0.000000e+00 : f32
    %14 = vector.broadcast %cst_11 : f32 to vector<16x256xf32>
    %15 = arith.maximumf %13, %14 : vector<16x256xf32>
    %16 = arith.truncf %15 : vector<16x256xf32> to vector<16x256xbf16>
    %c0_12 = arith.constant 0 : index
    %c0_13 = arith.constant 0 : index
    %17 = vector.load %arg6[%c0_12, %c0_13] : memref<256x512xbf16, #tpu.memory_space<vmem>>, vector<256x512xbf16>
    %cst_14 = arith.constant dense<0.000000e+00> : vector<16x512xf32>
    %18 = tpu.matmul %16, %17, %cst_14 {dimension_numbers = #tpu.dot_dimension_numbers<[1], [0], [0], [1], [0, 0, 1, 1], [], []>} : vector<16x256xbf16>, vector<256x512xbf16>, vector<16x512xf32> -> vector<16x512xf32>
    %c0_15 = arith.constant 0 : index
    %c0_16 = arith.constant 0 : index
    %19 = vector.load %arg7[%c0_15, %c0_16] : memref<1x512xf32, #tpu.memory_space<vmem>>, vector<1x512xf32>
    %20 = vector.broadcast %19 : vector<1x512xf32> to vector<16x512xf32>
    %21 = arith.addf %18, %20 : vector<16x512xf32>
    %cst_17 = arith.constant 0.000000e+00 : f32
    %22 = vector.broadcast %cst_17 : f32 to vector<16x512xf32>
    %23 = arith.maximumf %21, %22 : vector<16x512xf32>
    %24 = arith.truncf %23 : vector<16x512xf32> to vector<16x512xbf16>
    %c0_18 = arith.constant 0 : index
    %c0_19 = arith.constant 0 : index
    %25 = vector.load %arg8[%c0_18, %c0_19] : memref<512x128xbf16, #tpu.memory_space<vmem>>, vector<512x128xbf16>
    %cst_20 = arith.constant dense<0.000000e+00> : vector<16x128xf32>
    %26 = tpu.matmul %24, %25, %cst_20 {dimension_numbers = #tpu.dot_dimension_numbers<[1], [0], [0], [1], [0, 0, 1, 1], [], []>} : vector<16x512xbf16>, vector<512x128xbf16>, vector<16x128xf32> -> vector<16x128xf32>
    %c0_21 = arith.constant 0 : index
    %c0_22 = arith.constant 0 : index
    %27 = vector.load %arg9[%c0_21, %c0_22] : memref<1x128xf32, #tpu.memory_space<vmem>>, vector<1x128xf32>
    %28 = vector.broadcast %27 : vector<1x128xf32> to vector<16x128xf32>
    %29 = arith.addf %26, %28 : vector<16x128xf32>
    %30 = tpu.iota {dimensions = array<i32: 1>} : vector<16x128xi32>
    %c6_i32 = arith.constant 6 : i32
    %31 = vector.broadcast %c6_i32 : i32 to vector<16x128xi32>
    %32 = arith.cmpi slt, %30, %31 : vector<16x128xi32>
    %cst_23 = arith.constant -1.000000e+30 : f32
    %33 = vector.broadcast %cst_23 : f32 to vector<16x128xf32>
    %34 = arith.select %32, %29, %33 : vector<16x128xi1>, vector<16x128xf32>
    %cst_24 = arith.constant dense<0xFF800000> : vector<16xf32>
    %35 = vector.multi_reduction <maximumf>, %34, %cst_24 [1] : vector<16x128xf32> to vector<16xf32>
    %36 = vector.shape_cast %35 : vector<16xf32> to vector<16x1xf32>
    %37 = vector.broadcast %36 : vector<16x1xf32> to vector<16x128xf32>
    %38 = arith.subf %34, %37 : vector<16x128xf32>
    %39 = math.exp %38 : vector<16x128xf32>
    %cst_25 = arith.constant dense<0.000000e+00> : vector<16xf32>
    %40 = vector.multi_reduction <add>, %39, %cst_25 [1] : vector<16x128xf32> to vector<16xf32>
    %41 = vector.shape_cast %40 : vector<16xf32> to vector<16x1xf32>
    %42 = tpu.reciprocal %41 {approx = true} : vector<16x1xf32> -> vector<16x1xf32>
    %43 = vector.broadcast %42 : vector<16x1xf32> to vector<16x128xf32>
    %44 = arith.mulf %39, %43 : vector<16x128xf32>
    %45 = arith.select %32, %44, %29 : vector<16x128xi1>, vector<16x128xf32>
    %c0_26 = arith.constant 0 : index
    %c0_27 = arith.constant 0 : index
    %46 = vector.load %arg10[%c0_26, %c0_27] : memref<16x128xf32, #tpu.memory_space<vmem>>, vector<16x128xf32>
    tpu.vector_store %arg10[%c0_26, %c0_27], %45 {strides = array<i32>} : memref<16x128xf32, #tpu.memory_space<vmem>>, vector<16x128xf32>,
    return
  }
  func.func @transform_0(%arg0: i32) -> (i32, i32) {
    %c0_i32 = arith.constant 0 : i32
    %c0_i32_0 = arith.constant 0 : i32
    return %arg0, %c0_i32 : i32, i32
  }
  func.func @transform_1(%arg0: i32) -> (i32, i32) {
    %c0_i32 = arith.constant 0 : i32
    %c0_i32_0 = arith.constant 0 : i32
    %c0_i32_1 = arith.constant 0 : i32
    return %c0_i32, %c0_i32_0 : i32, i32
  }
  func.func @transform_2(%arg0: i32) -> (i32, i32) {
    %c0_i32 = arith.constant 0 : i32
    %c0_i32_0 = arith.constant 0 : i32
    %c0_i32_1 = arith.constant 0 : i32
    return %c0_i32, %c0_i32_0 : i32, i32
  }
  func.func @transform_3(%arg0: i32) -> (i32, i32) {
    %c0_i32 = arith.constant 0 : i32
    %c0_i32_0 = arith.constant 0 : i32
    %c0_i32_1 = arith.constant 0 : i32
    return %c0_i32, %c0_i32_0 : i32, i32
  }
  func.func @transform_4(%arg0: i32) -> (i32, i32) {
    %c0_i32 = arith.constant 0 : i32
    %c0_i32_0 = arith.constant 0 : i32
    %c0_i32_1 = arith.constant 0 : i32
    return %c0_i32, %c0_i32_0 : i32, i32
  }
  func.func @transform_5(%arg0: i32) -> (i32, i32) {
    %c0_i32 = arith.constant 0 : i32
    %c0_i32_0 = arith.constant 0 : i32
    %c0_i32_1 = arith.constant 0 : i32
    return %c0_i32, %c0_i32_0 : i32, i32
  }
  func.func @transform_6(%arg0: i32) -> (i32, i32) {
    %c0_i32 = arith.constant 0 : i32
    %c0_i32_0 = arith.constant 0 : i32
    %c0_i32_1 = arith.constant 0 : i32
    return %c0_i32, %c0_i32_0 : i32, i32
  }
  func.func @transform_7(%arg0: i32) -> (i32, i32) {
    %c0_i32 = arith.constant 0 : i32
    %c0_i32_0 = arith.constant 0 : i32
    %c0_i32_1 = arith.constant 0 : i32
    return %c0_i32, %c0_i32_0 : i32, i32
  }
  func.func @transform_8(%arg0: i32) -> (i32, i32) {
    %c0_i32 = arith.constant 0 : i32
    %c0_i32_0 = arith.constant 0 : i32
    %c0_i32_1 = arith.constant 0 : i32
    return %c0_i32, %c0_i32_0 : i32, i32
  }
  func.func @transform_9(%arg0: i32) -> (i32, i32) {
    %c0_i32 = arith.constant 0 : i32
    %c0_i32_0 = arith.constant 0 : i32
    return %arg0, %c0_i32 : i32, i32
  }
}

</mosaic_0001>

<llo_original>
// kernel: tpu_custom_call.1
$region0: #{tpu_custom_call.1}
  #allocation0 [shape = 'u32[]', space=smem, size = 0x4, offset = 0x4, fixed_abs, tag = 'smem constant byte address 0x4 - core index']
  #allocation1 [shape = 'u32[144,128]{1,0:T(1,128)}', space=vmem, size = 0x12000, scoped, tag = 'internal scratch']
  %s0 = inlined_call_operand.hbm [shape: bf16[16,16], index: 0, kind: input, shape index: {}]
  %s1 = inlined_call_operand.hbm [shape: bf16[16,256], index: 1, kind: input, shape index: {}]
  %s2 = inlined_call_operand.vmem [shape: f32[1,256], index: 2, kind: input, shape index: {}]
  %s3 = inlined_call_operand.hbm [shape: bf16[256,256], index: 3, kind: input, shape index: {}]
  %s4 = inlined_call_operand.vmem [shape: f32[1,256], index: 4, kind: input, shape index: {}]
  %s5 = inlined_call_operand.hbm [shape: bf16[256,512], index: 5, kind: input, shape index: {}]
  %s6 = inlined_call_operand.vmem [shape: f32[1,512], index: 6, kind: input, shape index: {}]
  %s7 = inlined_call_operand.hbm [shape: bf16[512,128], index: 7, kind: input, shape index: {}]
  %s8 = inlined_call_operand.vmem [shape: f32[1,128], index: 8, kind: input, shape index: {}]
  %s9 = inlined_call_operand.hbm [shape: f32[16,128], index: 9, kind: output, shape index: {}]
  %s10 = sld [smem:[#allocation0]]
  $region66: #{tpu_custom_call.1} parent=0
    _
  %s12 = ssub.s32 1, %s10
  %s13 = scalar_select 0, %s12, %s10
  $region1: #{tpu_custom_call.1} parent=0
    #allocation2 [shape = 'u8[4096]{0}', space=vmem, size = 0x1000, scoped, tag = 'input window, operand 0, single buffered']
    #allocation3 [shape = 's32[1]{0}', space=sflag, size = 0x4, scoped, tag = 'scoped memory for tpu_custom_call.1']
    #allocation4 [shape = 's32[1]{0}', space=sflag, size = 0x4, scoped, tag = 'scoped memory for tpu_custom_call.1']
    #allocation5 [shape = 'u8[8192]{0}', space=vmem, size = 0x2000, scoped, tag = 'input window, operand 1, single buffered']
    #allocation6 [shape = 's32[1]{0}', space=sflag, size = 0x4, scoped, tag = 'scoped memory for tpu_custom_call.1']
    #allocation7 [shape = 'u8[131072]{0}', space=vmem, size = 0x20000, scoped, tag = 'input window, operand 3, single buffered']
    #allocation8 [shape = 'u8[262144]{0}', space=vmem, size = 0x40000, scoped, tag = 'input window, operand 5, single buffered']
    #allocation9 [shape = 's32[1]{0}', space=sflag, size = 0x4, scoped, tag = 'scoped memory for tpu_custom_call.1']
    #allocation10 [shape = 'u8[131072]{0}', space=vmem, size = 0x20000, scoped, tag = 'input window, operand 7, single buffered']
    #allocation11 [shape = 'u8[8192]{0}', space=vmem, size = 0x2000, scoped, tag = 'output window, operand 0, single buffered']
    %14 = vsyncpa [#allocation3], 0
    %15 = vsyncpa [#allocation6], 0
    %16 = vsyncpa [#allocation9], 0
    %17 = vsyncpa [#allocation4], 0
    // Predicated region
    $region2: #{tpu_custom_call.1} parent=1 // pred_check
      _
    $region3: #{tpu_custom_call.1} parent=1 // pred_check_branch
      %19 = sbr.rel (0) target = $region5
    $region4: #{tpu_custom_call.1} parent=1 // pred_region
      %s21 = ssub.s32 128, 128
      %22 = vsyncadd [#allocation3], %s21
      %s23 = sshll.u32 [#allocation2], 4
      %s24 = int_to_ptr.vmem [resolvable:$true] %s23
      %29 = dma.hbm_to_vmem [thread:$0]  %s0, 128, %s24, [#allocation3], 64, 64, 4
    $region5: #{tpu_custom_call.1} parent=1 // pred_fallthru
      _
    // Predicated region
    $region6: #{tpu_custom_call.1} parent=1 // pred_check
      _
    $region7: #{tpu_custom_call.1} parent=1 // pred_check_branch
      %31 = sbr.rel (0) target = $region9
    $region8: #{tpu_custom_call.1} parent=1 // pred_region
      %s33 = ssub.s32 256, 256
      %34 = vsyncadd [#allocation6], %s33
      %s35 = sshll.u32 [#allocation5], 4
      %s36 = int_to_ptr.vmem [resolvable:$true] %s35
      %41 = dma.hbm_to_vmem [thread:$0]  %s1, 256, %s36, [#allocation6], 128, 128, 8
    $region9: #{tpu_custom_call.1} parent=1 // pred_fallthru
      _
    // Predicated region
    $region10: #{tpu_custom_call.1} parent=1 // pred_check
      _
    $region11: #{tpu_custom_call.1} parent=1 // pred_check_branch
      %43 = sbr.rel (0) target = $region13
    $region12: #{tpu_custom_call.1} parent=1 // pred_region
      _
    $region13: #{tpu_custom_call.1} parent=1 // pred_fallthru
      _
    // Predicated region
    $region14: #{tpu_custom_call.1} parent=1 // pred_check
      _
    $region15: #{tpu_custom_call.1} parent=1 // pred_check_branch
      %45 = sbr.rel (0) target = $region17
    $region16: #{tpu_custom_call.1} parent=1 // pred_region
      %s47 = ssub.s32 4096, 4096
      %48 = vsyncadd [#allocation6], %s47
      %s49 = sshll.u32 [#allocation7], 4
      %s50 = int_to_ptr.vmem [resolvable:$true] %s49
      %55 = dma.hbm_to_vmem [thread:$0]  %s3, 4096, %s50, [#allocation6], 128, 128, 8
    $region17: #{tpu_custom_call.1} parent=1 // pred_fallthru
      _
    // Predicated region
    $region18: #{tpu_custom_call.1} parent=1 // pred_check
      _
    $region19: #{tpu_custom_call.1} parent=1 // pred_check_branch
      %57 = sbr.rel (0) target = $region21
    $region20: #{tpu_custom_call.1} parent=1 // pred_region
      _
    $region21: #{tpu_custom_call.1} parent=1 // pred_fallthru
      _
    // Predicated region
    $region22: #{tpu_custom_call.1} parent=1 // pred_check
      _
    $region23: #{tpu_custom_call.1} parent=1 // pred_check_branch
      %59 = sbr.rel (0) target = $region25
    $region24: #{tpu_custom_call.1} parent=1 // pred_region
      %s61 = ssub.s32 8192, 8192
      %62 = vsyncadd [#allocation9], %s61
      %s63 = sshll.u32 [#allocation8], 4
      %s64 = int_to_ptr.vmem [resolvable:$true] %s63
      %69 = dma.hbm_to_vmem [thread:$0]  %s5, 8192, %s64, [#allocation9], 256, 256, 16
    $region25: #{tpu_custom_call.1} parent=1 // pred_fallthru
      _
    // Predicated region
    $region26: #{tpu_custom_call.1} parent=1 // pred_check
      _
    $region27: #{tpu_custom_call.1} parent=1 // pred_check_branch
      %71 = sbr.rel (0) target = $region29
    $region28: #{tpu_custom_call.1} parent=1 // pred_region
      _
    $region29: #{tpu_custom_call.1} parent=1 // pred_fallthru
      _
    // Predicated region
    $region30: #{tpu_custom_call.1} parent=1 // pred_check
      _
    $region31: #{tpu_custom_call.1} parent=1 // pred_check_branch
      %73 = sbr.rel (0) target = $region33
    $region32: #{tpu_custom_call.1} parent=1 // pred_region
      %s75 = ssub.s32 4096, 4096
      %76 = vsyncadd [#allocation9], %s75
      %s77 = sshll.u32 [#allocation10], 4
      %s78 = int_to_ptr.vmem [resolvable:$true] %s77
      %83 = dma.hbm_to_vmem [thread:$0]  %s7, 4096, %s78, [#allocation9], 64, 64, 4
    $region33: #{tpu_custom_call.1} parent=1 // pred_fallthru
      _
    // Predicated region
    $region34: #{tpu_custom_call.1} parent=1 // pred_check
      _
    $region35: #{tpu_custom_call.1} parent=1 // pred_check_branch
      %85 = sbr.rel (0) target = $region37
    $region36: #{tpu_custom_call.1} parent=1 // pred_region
      _
    $region37: #{tpu_custom_call.1} parent=1 // pred_fallthru
      _
    // Predicated region
    $region38: #{tpu_custom_call.1} parent=1 // pred_check
      _
    $region39: #{tpu_custom_call.1} parent=1 // pred_check_branch
      %87 = sbr.rel (0) target = $region41
    $region40: #{tpu_custom_call.1} parent=1 // pred_region
      %88 = dma.done [#allocation3], 128
    $region41: #{tpu_custom_call.1} parent=1 // pred_fallthru
      _
    // Predicated region
    $region42: #{tpu_custom_call.1} parent=1 // pred_check
      _
    $region43: #{tpu_custom_call.1} parent=1 // pred_check_branch
      %90 = sbr.rel (0) target = $region45
    $region44: #{tpu_custom_call.1} parent=1 // pred_region
      %91 = dma.done [#allocation6], 256
    $region45: #{tpu_custom_call.1} parent=1 // pred_fallthru
      _
    // Predicated region
    $region46: #{tpu_custom_call.1} parent=1 // pred_check
      _
    $region47: #{tpu_custom_call.1} parent=1 // pred_check_branch
      %93 = sbr.rel (0) target = $region49
    $region48: #{tpu_custom_call.1} parent=1 // pred_region
      %94 = dma.done [#allocation6], 4096
    $region49: #{tpu_custom_call.1} parent=1 // pred_fallthru
      _
    // Predicated region
    $region50: #{tpu_custom_call.1} parent=1 // pred_check
      _
    $region51: #{tpu_custom_call.1} parent=1 // pred_check_branch
      %96 = sbr.rel (0) target = $region53
    $region52: #{tpu_custom_call.1} parent=1 // pred_region
      %97 = dma.done [#allocation9], 8192
    $region53: #{tpu_custom_call.1} parent=1 // pred_fallthru
      _
    // Predicated region
    $region54: #{tpu_custom_call.1} parent=1 // pred_check
      _
    $region55: #{tpu_custom_call.1} parent=1 // pred_check_branch
      %99 = sbr.rel (0) target = $region57
    $region56: #{tpu_custom_call.1} parent=1 // pred_region
      %100 = dma.done [#allocation9], 4096
    $region57: #{tpu_custom_call.1} parent=1 // pred_fallthru
      _
    %v102 = vld [vmem:[#allocation2] sm:$0xf]
    %v103 = vld [vmem:[#allocation2 + $0x4] sm:$0xf]
    %v104 = vld [vmem:[#allocation5] sm:$0xff]
    %v105 = vld [vmem:[#allocation5 + $0x8] sm:$0xff]
    %v106 = vld [vmem:[%s2] sm:$0x3]
    %v108 = vlaneseq
    %v109 = vshrl.u32 %v108, 7
    %v110 = vsub.s32 0, %v109
    %v111 = vrot.slane %v106, %v110
    %v112 = vlaneseq
    %v113 = vshrl.u32 %v112, 7
    %v114 = vsub.s32 1, %v113
    %v115 = vrot.slane %v106, %v114
    %v120 = vunpack.c.l.b16 %v102
    %v121 = vunpack.c.l.b16 %v103
    %v122 = vpack.c.b16 %v121, %v120
    %v125 = vunpack.c.l.b16 %v104
    %v126 = vunpack.c.h.b16 %v104
    %v127 = vunpack.c.l.b16 %v105
    %v128 = vunpack.c.h.b16 %v105
    %v129 = vpack.c.b16 %v127, %v125
    %v130 = vpack.c.b16 %v128, %v126
    %vm133 = vcmask 130048
    %v135 = vsel %vm133, %v122, 0
    %137 = vmatprep.subr.bf16.mxu0 %v130
    %138 = vmatpush1.bf16.msra.mxu0 %v129
    %139 = vmatprep.subr.bf16.mxu0 0
    %140 = vmatpush1.bf16.msra.mxu0 0
    %141 = vmatprep.subr.bf16.mxu0 0
    %142 = vmatpush1.bf16.msra.mxu0 0
    %143 = vmatprep.subr.bf16.mxu0 0
    %144 = vmatpush1.bf16.msra.mxu0 0
    %145 = vmatprep.subr.bf16.mxu0 0
    %146 = vmatpush1.bf16.msra.mxu0 0
    %147 = vmatprep.subr.bf16.mxu0 0
    %148 = vmatpush1.bf16.msra.mxu0 0
    %149 = vmatprep.subr.bf16.mxu0 0
    %150 = vmatpush1.bf16.msra.mxu0 0
    %151 = vmatprep.subr.bf16.mxu0 0
    %152 = vmatpush1.bf16.msra.mxu0 0
    %153 = vmatprep.subr.bf16.mxu0 0
    %154 = vmatpush1.bf16.msra.mxu0 0
    %155 = vmatprep.subr.bf16.mxu0 0
    %156 = vmatpush1.bf16.msra.mxu0 0
    %157 = vmatprep.subr.bf16.mxu0 0
    %158 = vmatpush1.bf16.msra.mxu0 0
    %159 = vmatprep.subr.bf16.mxu0 0
    %160 = vmatpush1.bf16.msra.mxu0 0
    %161 = vmatprep.subr.bf16.mxu0 0
    %162 = vmatpush1.bf16.msra.mxu0 0
    %163 = vmatprep.subr.bf16.mxu0 0
    %164 = vmatpush1.bf16.msra.mxu0 0
    %165 = vmatprep.subr.bf16.mxu0 0
    %166 = vmatpush1.bf16.msra.mxu0 0
    %167 = vmatprep.subr.bf16.mxu0 0
    %168 = vmatpush1.bf16.msra.mxu0 0
    %169 = vmatprep.mubr.bf16.mxu0 0
    %170 = vmatmul.mubr.bf16.gmra.mrb[0].mxu0 %v135
    %v171 = vpop.f32.mrb[0].mxu0
    %v172 = vadd.f32 %v111, %v171
    %v173 = vpop.f32.mrb[0].mxu0
    %v174 = vadd.f32 %v115, %v173
    %v175 = vpop.f32.mrb[0].mxu0
    %v176 = vadd.f32 %v111, %v175
    %v177 = vpop.f32.mrb[0].mxu0
    %v178 = vadd.f32 %v115, %v177
    %179 = vdwg.mxu0
    %v180 = vmax.f32 %v172, 0.0
    %v181 = vmax.f32 %v174, 0.0
    %v182 = vmax.f32 %v176, 0.0
    %v183 = vmax.f32 %v178, 0.0
    %v184 = vpack.c.bf16 %v182, %v180
    %v185 = vpack.c.bf16 %v183, %v181
    %v186 = vld [vmem:[#allocation7] sm:$0xff]
    %v187 = vld [vmem:[#allocation7 + $0x8] sm:$0xff]
    %v188 = vld [vmem:[#allocation7 + $0x10] sm:$0xff]
    %v189 = vld [vmem:[#allocation7 + $0x18] sm:$0xff]
    %v190 = vld [vmem:[#allocation7 + $0x20] sm:$0xff]
    %v191 = vld [vmem:[#allocation7 + $0x28] sm:$0xff]
    %v192 = vld [vmem:[#allocation7 + $0x30] sm:$0xff]
    %v193 = vld [vmem:[#allocation7 + $0x38] sm:$0xff]
    %v194 = vld [vmem:[#allocation7 + $0x40] sm:$0xff]
    %v195 = vld [vmem:[#allocation7 + $0x48] sm:$0xff]
    %v196 = vld [vmem:[#allocation7 + $0x50] sm:$0xff]
    %v197 = vld [vmem:[#allocation7 + $0x58] sm:$0xff]
    %v198 = vld [vmem:[#allocation7 + $0x60] sm:$0xff]
    %v199 = vld [vmem:[#allocation7 + $0x68] sm:$0xff]
    %v200 = vld [vmem:[#allocation7 + $0x70] sm:$0xff]
    %v201 = vld [vmem:[#allocation7 + $0x78] sm:$0xff]
    %v202 = vld [vmem:[#allocation7 + $0x80] sm:$0xff]
    %v203 = vld [vmem:[#allocation7 + $0x88] sm:$0xff]
    %v204 = vld [vmem:[#allocation7 + $0x90] sm:$0xff]
    %v205 = vld [vmem:[#allocation7 + $0x98] sm:$0xff]
    %v206 = vld [vmem:[#allocation7 + $0xa0] sm:$0xff]
    %v207 = vld [vmem:[#allocation7 + $0xa8] sm:$0xff]
    %v208 = vld [vmem:[#allocation7 + $0xb0] sm:$0xff]
    %v209 = vld [vmem:[#allocation7 + $0xb8] sm:$0xff]
    %v210 = vld [vmem:[#allocation7 + $0xc0] sm:$0xff]
    %v211 = vld [vmem:[#allocation7 + $0xc8] sm:$0xff]
    %v212 = vld [vmem:[#allocation7 + $0xd0] sm:$0xff]
    %v213 = vld [vmem:[#allocation7 + $0xd8] sm:$0xff]
    %v214 = vld [vmem:[#allocation7 + $0xe0] sm:$0xff]
    %v215 = vld [vmem:[#allocation7 + $0xe8] sm:$0xff]
    %v216 = vld [vmem:[#allocation7 + $0xf0] sm:$0xff]
    %v217 = vld [vmem:[#allocation7 + $0xf8] sm:$0xff]
    %v218 = vld [vmem:[%s4] sm:$0x3]
    %v220 = vlaneseq
    %v221 = vshrl.u32 %v220, 7
    %v222 = vsub.s32 0, %v221
    %v223 = vrot.slane %v218, %v222
    %v224 = vlaneseq
    %v225 = vshrl.u32 %v224, 7
    %v226 = vsub.s32 1, %v225
    %v227 = vrot.slane %v218, %v226
    %v262 = vunpack.c.l.b16 %v186
    %v263 = vunpack.c.h.b16 %v186
    %v264 = vunpack.c.l.b16 %v187
    %v265 = vunpack.c.h.b16 %v187
    %v266 = vunpack.c.l.b16 %v188
    %v267 = vunpack.c.h.b16 %v188
    %v268 = vunpack.c.l.b16 %v189
    %v269 = vunpack.c.h.b16 %v189
    %v270 = vunpack.c.l.b16 %v190
    %v271 = vunpack.c.h.b16 %v190
    %v272 = vunpack.c.l.b16 %v191
    %v273 = vunpack.c.h.b16 %v191
    %v274 = vunpack.c.l.b16 %v192
    %v275 = vunpack.c.h.b16 %v192
    %v276 = vunpack.c.l.b16 %v193
    %v277 = vunpack.c.h.b16 %v193
    %v278 = vunpack.c.l.b16 %v194
    %v279 = vunpack.c.h.b16 %v194
    %v280 = vunpack.c.l.b16 %v195
    %v281 = vunpack.c.h.b16 %v195
    %v282 = vunpack.c.l.b16 %v196
    %v283 = vunpack.c.h.b16 %v196
    %v284 = vunpack.c.l.b16 %v197
    %v285 = vunpack.c.h.b16 %v197
    %v286 = vunpack.c.l.b16 %v198
    %v287 = vunpack.c.h.b16 %v198
    %v288 = vunpack.c.l.b16 %v199
    %v289 = vunpack.c.h.b16 %v199
    %v290 = vunpack.c.l.b16 %v200
    %v291 = vunpack.c.h.b16 %v200
    %v292 = vunpack.c.l.b16 %v201
    %v293 = vunpack.c.h.b16 %v201
    %v294 = vunpack.c.l.b16 %v202
    %v295 = vunpack.c.h.b16 %v202
    %v296 = vunpack.c.l.b16 %v203
    %v297 = vunpack.c.h.b16 %v203
    %v298 = vunpack.c.l.b16 %v204
    %v299 = vunpack.c.h.b16 %v204
    %v300 = vunpack.c.l.b16 %v205
    %v301 = vunpack.c.h.b16 %v205
    %v302 = vunpack.c.l.b16 %v206
    %v303 = vunpack.c.h.b16 %v206
    %v304 = vunpack.c.l.b16 %v207
    %v305 = vunpack.c.h.b16 %v207
    %v306 = vunpack.c.l.b16 %v208
    %v307 = vunpack.c.h.b16 %v208
    %v308 = vunpack.c.l.b16 %v209
    %v309 = vunpack.c.h.b16 %v209
    %v310 = vunpack.c.l.b16 %v210
    %v311 = vunpack.c.h.b16 %v210
    %v312 = vunpack.c.l.b16 %v211
    %v313 = vunpack.c.h.b16 %v211
    %v314 = vunpack.c.l.b16 %v212
    %v315 = vunpack.c.h.b16 %v212
    %v316 = vunpack.c.l.b16 %v213
    %v317 = vunpack.c.h.b16 %v213
    %v318 = vunpack.c.l.b16 %v214
    %v319 = vunpack.c.h.b16 %v214
    %v320 = vunpack.c.l.b16 %v215
    %v321 = vunpack.c.h.b16 %v215
    %v322 = vunpack.c.l.b16 %v216
    %v323 = vunpack.c.h.b16 %v216
    %v324 = vunpack.c.l.b16 %v217
    %v325 = vunpack.c.h.b16 %v217
    %v326 = vpack.c.b16 %v264, %v262
    %v327 = vpack.c.b16 %v265, %v263
    %v328 = vpack.c.b16 %v268, %v266
    %v329 = vpack.c.b16 %v269, %v267
    %v330 = vpack.c.b16 %v272, %v270
    %v331 = vpack.c.b16 %v273, %v271
    %v332 = vpack.c.b16 %v276, %v274
    %v333 = vpack.c.b16 %v277, %v275
    %v334 = vpack.c.b16 %v280, %v278
    %v335 = vpack.c.b16 %v281, %v279
    %v336 = vpack.c.b16 %v284, %v282
    %v337 = vpack.c.b16 %v285, %v283
    %v338 = vpack.c.b16 %v288, %v286
    %v339 = vpack.c.b16 %v289, %v287
    %v340 = vpack.c.b16 %v292, %v290
    %v341 = vpack.c.b16 %v293, %v291
    %v342 = vpack.c.b16 %v296, %v294
    %v343 = vpack.c.b16 %v297, %v295
    %v344 = vpack.c.b16 %v300, %v298
    %v345 = vpack.c.b16 %v301, %v299
    %v346 = vpack.c.b16 %v304, %v302
    %v347 = vpack.c.b16 %v305, %v303
    %v348 = vpack.c.b16 %v308, %v306
    %v349 = vpack.c.b16 %v309, %v307
    %v350 = vpack.c.b16 %v312, %v310
    %v351 = vpack.c.b16 %v313, %v311
    %v352 = vpack.c.b16 %v316, %v314
    %v353 = vpack.c.b16 %v317, %v315
    %v354 = vpack.c.b16 %v320, %v318
    %v355 = vpack.c.b16 %v321, %v319
    %v356 = vpack.c.b16 %v324, %v322
    %v357 = vpack.c.b16 %v325, %v323
    %390 = vmatprep.subr.bf16.mxu0 %v327
    %391 = vmatpush1.bf16.msra.mxu0 %v326
    %392 = vmatprep.subr.bf16.mxu0 %v329
    %393 = vmatpush1.bf16.msra.mxu0 %v328
    %394 = vmatprep.subr.bf16.mxu0 %v331
    %395 = vmatpush1.bf16.msra.mxu0 %v330
    %396 = vmatprep.subr.bf16.mxu0 %v333
    %397 = vmatpush1.bf16.msra.mxu0 %v332
    %398 = vmatprep.subr.bf16.mxu0 %v335
    %399 = vmatpush1.bf16.msra.mxu0 %v334
    %400 = vmatprep.subr.bf16.mxu0 %v337
    %401 = vmatpush1.bf16.msra.mxu0 %v336
    %402 = vmatprep.subr.bf16.mxu0 %v339
    %403 = vmatpush1.bf16.msra.mxu0 %v338
    %404 = vmatprep.subr.bf16.mxu0 %v341
    %405 = vmatpush1.bf16.msra.mxu0 %v340
    %406 = vmatprep.subr.bf16.mxu0 %v343
    %407 = vmatpush1.bf16.msra.mxu0 %v342
    %408 = vmatprep.subr.bf16.mxu0 %v345
    %409 = vmatpush1.bf16.msra.mxu0 %v344
    %410 = vmatprep.subr.bf16.mxu0 %v347
    %411 = vmatpush1.bf16.msra.mxu0 %v346
    %412 = vmatprep.subr.bf16.mxu0 %v349
    %413 = vmatpush1.bf16.msra.mxu0 %v348
    %414 = vmatprep.subr.bf16.mxu0 %v351
    %415 = vmatpush1.bf16.msra.mxu0 %v350
    %416 = vmatprep.subr.bf16.mxu0 %v353
    %417 = vmatpush1.bf16.msra.mxu0 %v352
    %418 = vmatprep.subr.bf16.mxu0 %v355
    %419 = vmatpush1.bf16.msra.mxu0 %v354
    %420 = vmatprep.subr.bf16.mxu0 %v357
    %421 = vmatpush1.bf16.msra.mxu0 %v356
    %422 = vmatprep.mubr.bf16.mxu0 %v185
    %423 = vmatmul.mubr.bf16.gmra.mrb[0].mxu0 %v184
    %v424 = vpop.f32.mrb[0].mxu0
    %v425 = vadd.f32 %v223, %v424
    %v426 = vpop.f32.mrb[0].mxu0
    %v427 = vadd.f32 %v227, %v426
    %v428 = vpop.f32.mrb[0].mxu0
    %v429 = vadd.f32 %v223, %v428
    %v430 = vpop.f32.mrb[0].mxu0
    %v431 = vadd.f32 %v227, %v430
    %432 = vdwg.mxu0
    %v433 = vmax.f32 %v425, 0.0
    %v434 = vmax.f32 %v427, 0.0
    %v435 = vmax.f32 %v429, 0.0
    %v436 = vmax.f32 %v431, 0.0
    %v437 = vpack.c.bf16 %v435, %v433
    %v438 = vpack.c.bf16 %v436, %v434
    %v439 = vld [vmem:[#allocation8] sm:$0xff]
    %v440 = vld [vmem:[#allocation8 + $0x8] sm:$0xff]
    %v441 = vld [vmem:[#allocation8 + $0x10] sm:$0xff]
    %v442 = vld [vmem:[#allocation8 + $0x18] sm:$0xff]
    %v443 = vld [vmem:[#allocation8 + $0x20] sm:$0xff]
    %v444 = vld [vmem:[#allocation8 + $0x28] sm:$0xff]
    %v445 = vld [vmem:[#allocation8 + $0x30] sm:$0xff]
    %v446 = vld [vmem:[#allocation8 + $0x38] sm:$0xff]
    %v447 = vld [vmem:[#allocation8 + $0x40] sm:$0xff]
    %v448 = vld [vmem:[#allocation8 + $0x48] sm:$0xff]
    %v449 = vld [vmem:[#allocation8 + $0x50] sm:$0xff]
    %v450 = vld [vmem:[#allocation8 + $0x58] sm:$0xff]
    %v451 = vld [vmem:[#allocation8 + $0x60] sm:$0xff]
    %v452 = vld [vmem:[#allocation8 + $0x68] sm:$0xff]
    %v453 = vld [vmem:[#allocation8 + $0x70] sm:$0xff]
    %v454 = vld [vmem:[#allocation8 + $0x78] sm:$0xff]
    %v455 = vld [vmem:[#allocation8 + $0x80] sm:$0xff]
    %v456 = vld [vmem:[#allocation8 + $0x88] sm:$0xff]
    %v457 = vld [vmem:[#allocation8 + $0x90] sm:$0xff]
    %v458 = vld [vmem:[#allocation8 + $0x98] sm:$0xff]
    %v459 = vld [vmem:[#allocation8 + $0xa0] sm:$0xff]
    %v460 = vld [vmem:[#allocation8 + $0xa8] sm:$0xff]
    %v461 = vld [vmem:[#allocation8 + $0xb0] sm:$0xff]
    %v462 = vld [vmem:[#allocation8 + $0xb8] sm:$0xff]
    %v463 = vld [vmem:[#allocation8 + $0xc0] sm:$0xff]
    %v464 = vld [vmem:[#allocation8 + $0xc8] sm:$0xff]
    %v465 = vld [vmem:[#allocation8 + $0xd0] sm:$0xff]
    %v466 = vld [vmem:[#allocation8 + $0xd8] sm:$0xff]
    %v467 = vld [vmem:[#allocation8 + $0xe0] sm:$0xff]
    %v468 = vld [vmem:[#allocation8 + $0xe8] sm:$0xff]
    %v469 = vld [vmem:[#allocation8 + $0xf0] sm:$0xff]
    %v470 = vld [vmem:[#allocation8 + $0xf8] sm:$0xff]
    %v471 = vld [vmem:[#allocation8 + $0x100] sm:$0xff]
    %v472 = vld [vmem:[#allocation8 + $0x108] sm:$0xff]
    %v473 = vld [vmem:[#allocation8 + $0x110] sm:$0xff]
    %v474 = vld [vmem:[#allocation8 + $0x118] sm:$0xff]
    %v475 = vld [vmem:[#allocation8 + $0x120] sm:$0xff]
    %v476 = vld [vmem:[#allocation8 + $0x128] sm:$0xff]
    %v477 = vld [vmem:[#allocation8 + $0x130] sm:$0xff]
    %v478 = vld [vmem:[#allocation8 + $0x138] sm:$0xff]
    %v479 = vld [vmem:[#allocation8 + $0x140] sm:$0xff]
    %v480 = vld [vmem:[#allocation8 + $0x148] sm:$0xff]
    %v481 = vld [vmem:[#allocation8 + $0x150] sm:$0xff]
    %v482 = vld [vmem:[#allocation8 + $0x158] sm:$0xff]
    %v483 = vld [vmem:[#allocation8 + $0x160] sm:$0xff]
    %v484 = vld [vmem:[#allocation8 + $0x168] sm:$0xff]
    %v485 = vld [vmem:[#allocation8 + $0x170] sm:$0xff]
    %v486 = vld [vmem:[#allocation8 + $0x178] sm:$0xff]
    %v487 = vld [vmem:[#allocation8 + $0x180] sm:$0xff]
    %v488 = vld [vmem:[#allocation8 + $0x188] sm:$0xff]
    %v489 = vld [vmem:[#allocation8 + $0x190] sm:$0xff]
    %v490 = vld [vmem:[#allocation8 + $0x198] sm:$0xff]
    %v491 = vld [vmem:[#allocation8 + $0x1a0] sm:$0xff]
    %v492 = vld [vmem:[#allocation8 + $0x1a8] sm:$0xff]
    %v493 = vld [vmem:[#allocation8 + $0x1b0] sm:$0xff]
    %v494 = vld [vmem:[#allocation8 + $0x1b8] sm:$0xff]
    %v495 = vld [vmem:[#allocation8 + $0x1c0] sm:$0xff]
    %v496 = vld [vmem:[#allocation8 + $0x1c8] sm:$0xff]
    %v497 = vld [vmem:[#allocation8 + $0x1d0] sm:$0xff]
    %v498 = vld [vmem:[#allocation8 + $0x1d8] sm:$0xff]
    %v499 = vld [vmem:[#allocation8 + $0x1e0] sm:$0xff]
    %v500 = vld [vmem:[#allocation8 + $0x1e8] sm:$0xff]
    %v501 = vld [vmem:[#allocation8 + $0x1f0] sm:$0xff]
    %v502 = vld [vmem:[#allocation8 + $0x1f8] sm:$0xff]
    %v503 = vld [vmem:[%s6] sm:$0xf]
    %v505 = vlaneseq
    %v506 = vshrl.u32 %v505, 7
    %v507 = vsub.s32 0, %v506
    %v508 = vrot.slane %v503, %v507
    %v509 = vlaneseq
    %v510 = vshrl.u32 %v509, 7
    %v511 = vsub.s32 1, %v510
    %v512 = vrot.slane %v503, %v511
    %v513 = vlaneseq
    %v514 = vshrl.u32 %v513, 7
    %v515 = vsub.s32 2, %v514
    %v516 = vrot.slane %v503, %v515
    %v517 = vlaneseq
    %v518 = vshrl.u32 %v517, 7
    %v519 = vsub.s32 3, %v518
    %v520 = vrot.slane %v503, %v519
    %v589 = vunpack.c.l.b16 %v439
    %v590 = vunpack.c.h.b16 %v439
    %v591 = vunpack.c.l.b16 %v440
    %v592 = vunpack.c.h.b16 %v440
    %v593 = vunpack.c.l.b16 %v441
    %v594 = vunpack.c.h.b16 %v441
    %v595 = vunpack.c.l.b16 %v442
    %v596 = vunpack.c.h.b16 %v442
    %v597 = vunpack.c.l.b16 %v443
    %v598 = vunpack.c.h.b16 %v443
    %v599 = vunpack.c.l.b16 %v444
    %v600 = vunpack.c.h.b16 %v444
    %v601 = vunpack.c.l.b16 %v445
    %v602 = vunpack.c.h.b16 %v445
    %v603 = vunpack.c.l.b16 %v446
    %v604 = vunpack.c.h.b16 %v446
    %v605 = vunpack.c.l.b16 %v447
    %v606 = vunpack.c.h.b16 %v447
    %v607 = vunpack.c.l.b16 %v448
    %v608 = vunpack.c.h.b16 %v448
    %v609 = vunpack.c.l.b16 %v449
    %v610 = vunpack.c.h.b16 %v449
    %v611 = vunpack.c.l.b16 %v450
    %v612 = vunpack.c.h.b16 %v450
    %v613 = vunpack.c.l.b16 %v451
    %v614 = vunpack.c.h.b16 %v451
    %v615 = vunpack.c.l.b16 %v452
    %v616 = vunpack.c.h.b16 %v452
    %v617 = vunpack.c.l.b16 %v453
    %v618 = vunpack.c.h.b16 %v453
    %v619 = vunpack.c.l.b16 %v454
    %v620 = vunpack.c.h.b16 %v454
    %v621 = vunpack.c.l.b16 %v455
    %v622 = vunpack.c.h.b16 %v455
    %v623 = vunpack.c.l.b16 %v456
    %v624 = vunpack.c.h.b16 %v456
    %v625 = vunpack.c.l.b16 %v457
    %v626 = vunpack.c.h.b16 %v457
    %v627 = vunpack.c.l.b16 %v458
    %v628 = vunpack.c.h.b16 %v458
    %v629 = vunpack.c.l.b16 %v459
    %v630 = vunpack.c.h.b16 %v459
    %v631 = vunpack.c.l.b16 %v460
    %v632 = vunpack.c.h.b16 %v460
    %v633 = vunpack.c.l.b16 %v461
    %v634 = vunpack.c.h.b16 %v461
    %v635 = vunpack.c.l.b16 %v462
    %v636 = vunpack.c.h.b16 %v462
    %v637 = vunpack.c.l.b16 %v463
    %v638 = vunpack.c.h.b16 %v463
    %v639 = vunpack.c.l.b16 %v464
    %v640 = vunpack.c.h.b16 %v464
    %v641 = vunpack.c.l.b16 %v465
    %v642 = vunpack.c.h.b16 %v465
    %v643 = vunpack.c.l.b16 %v466
    %v644 = vunpack.c.h.b16 %v466
    %v645 = vunpack.c.l.b16 %v467
    %v646 = vunpack.c.h.b16 %v467
    %v647 = vunpack.c.l.b16 %v468
    %v648 = vunpack.c.h.b16 %v468
    %v649 = vunpack.c.l.b16 %v469
    %v650 = vunpack.c.h.b16 %v469
    %v651 = vunpack.c.l.b16 %v470
    %v652 = vunpack.c.h.b16 %v470
    %v653 = vunpack.c.l.b16 %v471
    %v654 = vunpack.c.h.b16 %v471
    %v655 = vunpack.c.l.b16 %v472
    %v656 = vunpack.c.h.b16 %v472
    %v657 = vunpack.c.l.b16 %v473
    %v658 = vunpack.c.h.b16 %v473
    %v659 = vunpack.c.l.b16 %v474
    %v660 = vunpack.c.h.b16 %v474
    %v661 = vunpack.c.l.b16 %v475
    %v662 = vunpack.c.h.b16 %v475
    %v663 = vunpack.c.l.b16 %v476
    %v664 = vunpack.c.h.b16 %v476
    %v665 = vunpack.c.l.b16 %v477
    %v666 = vunpack.c.h.b16 %v477
    %v667 = vunpack.c.l.b16 %v478
    %v668 = vunpack.c.h.b16 %v478
    %v669 = vunpack.c.l.b16 %v479
    %v670 = vunpack.c.h.b16 %v479
    %v671 = vunpack.c.l.b16 %v480
    %v672 = vunpack.c.h.b16 %v480
    %v673 = vunpack.c.l.b16 %v481
    %v674 = vunpack.c.h.b16 %v481
    %v675 = vunpack.c.l.b16 %v482
    %v676 = vunpack.c.h.b16 %v482
    %v677 = vunpack.c.l.b16 %v483
    %v678 = vunpack.c.h.b16 %v483
    %v679 = vunpack.c.l.b16 %v484
    %v680 = vunpack.c.h.b16 %v484
    %v681 = vunpack.c.l.b16 %v485
    %v682 = vunpack.c.h.b16 %v485
    %v683 = vunpack.c.l.b16 %v486
    %v684 = vunpack.c.h.b16 %v486
    %v685 = vunpack.c.l.b16 %v487
    %v686 = vunpack.c.h.b16 %v487
    %v687 = vunpack.c.l.b16 %v488
    %v688 = vunpack.c.h.b16 %v488
    %v689 = vunpack.c.l.b16 %v489
    %v690 = vunpack.c.h.b16 %v489
    %v691 = vunpack.c.l.b16 %v490
    %v692 = vunpack.c.h.b16 %v490
    %v693 = vunpack.c.l.b16 %v491
    %v694 = vunpack.c.h.b16 %v491
    %v695 = vunpack.c.l.b16 %v492
    %v696 = vunpack.c.h.b16 %v492
    %v697 = vunpack.c.l.b16 %v493
    %v698 = vunpack.c.h.b16 %v493
    %v699 = vunpack.c.l.b16 %v494
    %v700 = vunpack.c.h.b16 %v494
    %v701 = vunpack.c.l.b16 %v495
    %v702 = vunpack.c.h.b16 %v495
    %v703 = vunpack.c.l.b16 %v496
    %v704 = vunpack.c.h.b16 %v496
    %v705 = vunpack.c.l.b16 %v497
    %v706 = vunpack.c.h.b16 %v497
    %v707 = vunpack.c.l.b16 %v498
    %v708 = vunpack.c.h.b16 %v498
    %v709 = vunpack.c.l.b16 %v499
    %v710 = vunpack.c.h.b16 %v499
    %v711 = vunpack.c.l.b16 %v500
    %v712 = vunpack.c.h.b16 %v500
    %v713 = vunpack.c.l.b16 %v501
    %v714 = vunpack.c.h.b16 %v501
    %v715 = vunpack.c.l.b16 %v502
    %v716 = vunpack.c.h.b16 %v502
    %v717 = vpack.c.b16 %v593, %v589
    %v718 = vpack.c.b16 %v594, %v590
    %v719 = vpack.c.b16 %v595, %v591
    %v720 = vpack.c.b16 %v596, %v592
    %v721 = vpack.c.b16 %v601, %v597
    %v722 = vpack.c.b16 %v602, %v598
    %v723 = vpack.c.b16 %v603, %v599
    %v724 = vpack.c.b16 %v604, %v600
    %v725 = vpack.c.b16 %v609, %v605
    %v726 = vpack.c.b16 %v610, %v606
    %v727 = vpack.c.b16 %v611, %v607
    %v728 = vpack.c.b16 %v612, %v608
    %v729 = vpack.c.b16 %v617, %v613
    %v730 = vpack.c.b16 %v618, %v614
    %v731 = vpack.c.b16 %v619, %v615
    %v732 = vpack.c.b16 %v620, %v616
    %v733 = vpack.c.b16 %v625, %v621
    %v734 = vpack.c.b16 %v626, %v622
    %v735 = vpack.c.b16 %v627, %v623
    %v736 = vpack.c.b16 %v628, %v624
    %v737 = vpack.c.b16 %v633, %v629
    %v738 = vpack.c.b16 %v634, %v630
    %v739 = vpack.c.b16 %v635, %v631
    %v740 = vpack.c.b16 %v636, %v632
    %v741 = vpack.c.b16 %v641, %v637
    %v742 = vpack.c.b16 %v642, %v638
    %v743 = vpack.c.b16 %v643, %v639
    %v744 = vpack.c.b16 %v644, %v640
    %v745 = vpack.c.b16 %v649, %v645
    %v746 = vpack.c.b16 %v650, %v646
    %v747 = vpack.c.b16 %v651, %v647
    %v748 = vpack.c.b16 %v652, %v648
    %v749 = vpack.c.b16 %v657, %v653
    %v750 = vpack.c.b16 %v658, %v654
    %v751 = vpack.c.b16 %v659, %v655
    %v752 = vpack.c.b16 %v660, %v656
    %v753 = vpack.c.b16 %v665, %v661
    %v754 = vpack.c.b16 %v666, %v662
    %v755 = vpack.c.b16 %v667, %v663
    %v756 = vpack.c.b16 %v668, %v664
    %v757 = vpack.c.b16 %v673, %v669
    %v758 = vpack.c.b16 %v674, %v670
    %v759 = vpack.c.b16 %v675, %v671
    %v760 = vpack.c.b16 %v676, %v672
    %v761 = vpack.c.b16 %v681, %v677
    %v762 = vpack.c.b16 %v682, %v678
    %v763 = vpack.c.b16 %v683, %v679
    %v764 = vpack.c.b16 %v684, %v680
    %v765 = vpack.c.b16 %v689, %v685
    %v766 = vpack.c.b16 %v690, %v686
    %v767 = vpack.c.b16 %v691, %v687
    %v768 = vpack.c.b16 %v692, %v688
    %v769 = vpack.c.b16 %v697, %v693
    %v770 = vpack.c.b16 %v698, %v694
    %v771 = vpack.c.b16 %v699, %v695
    %v772 = vpack.c.b16 %v700, %v696
    %v773 = vpack.c.b16 %v705, %v701
    %v774 = vpack.c.b16 %v706, %v702
    %v775 = vpack.c.b16 %v707, %v703
    %v776 = vpack.c.b16 %v708, %v704
    %v777 = vpack.c.b16 %v713, %v709
    %v778 = vpack.c.b16 %v714, %v710
    %v779 = vpack.c.b16 %v715, %v711
    %v780 = vpack.c.b16 %v716, %v712
    %845 = vmatprep.subr.bf16.mxu0 %v718
    %846 = vmatpush1.bf16.msra.mxu0 %v717
    %847 = vmatprep.subr.bf16.mxu0 %v722
    %848 = vmatpush1.bf16.msra.mxu0 %v721
    %849 = vmatprep.subr.bf16.mxu0 %v726
    %850 = vmatpush1.bf16.msra.mxu0 %v725
    %851 = vmatprep.subr.bf16.mxu0 %v730
    %852 = vmatpush1.bf16.msra.mxu0 %v729
    %853 = vmatprep.subr.bf16.mxu0 %v734
    %854 = vmatpush1.bf16.msra.mxu0 %v733
    %855 = vmatprep.subr.bf16.mxu0 %v738
    %856 = vmatpush1.bf16.msra.mxu0 %v737
    %857 = vmatprep.subr.bf16.mxu0 %v742
    %858 = vmatpush1.bf16.msra.mxu0 %v741
    %859 = vmatprep.subr.bf16.mxu0 %v746
    %860 = vmatpush1.bf16.msra.mxu0 %v745
    %861 = vmatprep.subr.bf16.mxu0 %v750
    %862 = vmatpush1.bf16.msra.mxu0 %v749
    %863 = vmatprep.subr.bf16.mxu0 %v754
    %864 = vmatpush1.bf16.msra.mxu0 %v753
    %865 = vmatprep.subr.bf16.mxu0 %v758
    %866 = vmatpush1.bf16.msra.mxu0 %v757
    %867 = vmatprep.subr.bf16.mxu0 %v762
    %868 = vmatpush1.bf16.msra.mxu0 %v761
    %869 = vmatprep.subr.bf16.mxu0 %v766
    %870 = vmatpush1.bf16.msra.mxu0 %v765
    %871 = vmatprep.subr.bf16.mxu0 %v770
    %872 = vmatpush1.bf16.msra.mxu0 %v769
    %873 = vmatprep.subr.bf16.mxu0 %v774
    %874 = vmatpush1.bf16.msra.mxu0 %v773
    %875 = vmatprep.subr.bf16.mxu0 %v778
    %876 = vmatpush1.bf16.msra.mxu0 %v777
    %877 = vmatprep.mubr.bf16.mxu0 %v438
    %878 = vmatmul.mubr.bf16.gmra.mrb[0].mxu0 %v437
    %v879 = vpop.f32.mrb[0].mxu0
    %v880 = vadd.f32 %v508, %v879
    %v881 = vpop.f32.mrb[0].mxu0
    %v882 = vadd.f32 %v512, %v881
    %v883 = vpop.f32.mrb[0].mxu0
    %v884 = vadd.f32 %v508, %v883
    %v885 = vpop.f32.mrb[0].mxu0
    %v886 = vadd.f32 %v512, %v885
    %887 = vdwg.mxu0
    %888 = vmatprep.subr.bf16.mxu0 %v720
    %889 = vmatpush1.bf16.msra.mxu0 %v719
    %890 = vmatprep.subr.bf16.mxu0 %v724
    %891 = vmatpush1.bf16.msra.mxu0 %v723
    %892 = vmatprep.subr.bf16.mxu0 %v728
    %893 = vmatpush1.bf16.msra.mxu0 %v727
    %894 = vmatprep.subr.bf16.mxu0 %v732
    %895 = vmatpush1.bf16.msra.mxu0 %v731
    %896 = vmatprep.subr.bf16.mxu0 %v736
    %897 = vmatpush1.bf16.msra.mxu0 %v735
    %898 = vmatprep.subr.bf16.mxu0 %v740
    %899 = vmatpush1.bf16.msra.mxu0 %v739
    %900 = vmatprep.subr.bf16.mxu0 %v744
    %901 = vmatpush1.bf16.msra.mxu0 %v743
    %902 = vmatprep.subr.bf16.mxu0 %v748
    %903 = vmatpush1.bf16.msra.mxu0 %v747
    %904 = vmatprep.subr.bf16.mxu0 %v752
    %905 = vmatpush1.bf16.msra.mxu0 %v751
    %906 = vmatprep.subr.bf16.mxu0 %v756
    %907 = vmatpush1.bf16.msra.mxu0 %v755
    %908 = vmatprep.subr.bf16.mxu0 %v760
    %909 = vmatpush1.bf16.msra.mxu0 %v759
    %910 = vmatprep.subr.bf16.mxu0 %v764
    %911 = vmatpush1.bf16.msra.mxu0 %v763
    %912 = vmatprep.subr.bf16.mxu0 %v768
    %913 = vmatpush1.bf16.msra.mxu0 %v767
    %914 = vmatprep.subr.bf16.mxu0 %v772
    %915 = vmatpush1.bf16.msra.mxu0 %v771
    %916 = vmatprep.subr.bf16.mxu0 %v776
    %917 = vmatpush1.bf16.msra.mxu0 %v775
    %918 = vmatprep.subr.bf16.mxu0 %v780
    %919 = vmatpush1.bf16.msra.mxu0 %v779
    %920 = vmatprep.mubr.bf16.mxu0 %v438
    %921 = vmatmul.mubr.bf16.gmra.mrb[0].mxu0 %v437
    %v922 = vpop.f32.mrb[0].mxu0
    %v923 = vadd.f32 %v516, %v922
    %v924 = vpop.f32.mrb[0].mxu0
    %v925 = vadd.f32 %v520, %v924
    %v926 = vpop.f32.mrb[0].mxu0
    %v927 = vadd.f32 %v516, %v926
    %v928 = vpop.f32.mrb[0].mxu0
    %v929 = vadd.f32 %v520, %v928
    %930 = vdwg.mxu0
    %v931 = vmax.f32 %v880, 0.0
    %v932 = vmax.f32 %v882, 0.0
    %v933 = vmax.f32 %v923, 0.0
    %v934 = vmax.f32 %v925, 0.0
    %v935 = vmax.f32 %v884, 0.0
    %v936 = vmax.f32 %v886, 0.0
    %v937 = vmax.f32 %v927, 0.0
    %v938 = vmax.f32 %v929, 0.0
    %v939 = vpack.c.bf16 %v935, %v931
    %v940 = vpack.c.bf16 %v936, %v932
    %v941 = vpack.c.bf16 %v937, %v933
    %v942 = vpack.c.bf16 %v938, %v934
    %v943 = vld [vmem:[#allocation10] sm:$0xf]
    %v944 = vld [vmem:[#allocation10 + $0x4] sm:$0xf]
    %v945 = vld [vmem:[#allocation10 + $0x8] sm:$0xf]
    %v946 = vld [vmem:[#allocation10 + $0xc] sm:$0xf]
    %v947 = vld [vmem:[#allocation10 + $0x10] sm:$0xf]
    %v948 = vld [vmem:[#allocation10 + $0x14] sm:$0xf]
    %v949 = vld [vmem:[#allocation10 + $0x18] sm:$0xf]
    %v950 = vld [vmem:[#allocation10 + $0x1c] sm:$0xf]
    %v951 = vld [vmem:[#allocation10 + $0x20] sm:$0xf]
    %v952 = vld [vmem:[#allocation10 + $0x24] sm:$0xf]
    %v953 = vld [vmem:[#allocation10 + $0x28] sm:$0xf]
    %v954 = vld [vmem:[#allocation10 + $0x2c] sm:$0xf]
    %v955 = vld [vmem:[#allocation10 + $0x30] sm:$0xf]
    %v956 = vld [vmem:[#allocation10 + $0x34] sm:$0xf]
    %v957 = vld [vmem:[#allocation10 + $0x38] sm:$0xf]
    %v958 = vld [vmem:[#allocation10 + $0x3c] sm:$0xf]
    %v959 = vld [vmem:[#allocation10 + $0x40] sm:$0xf]
    %v960 = vld [vmem:[#allocation10 + $0x44] sm:$0xf]
    %v961 = vld [vmem:[#allocation10 + $0x48] sm:$0xf]
    %v962 = vld [vmem:[#allocation10 + $0x4c] sm:$0xf]
    %v963 = vld [vmem:[#allocation10 + $0x50] sm:$0xf]
    %v964 = vld [vmem:[#allocation10 + $0x54] sm:$0xf]
    %v965 = vld [vmem:[#allocation10 + $0x58] sm:$0xf]
    %v966 = vld [vmem:[#allocation10 + $0x5c] sm:$0xf]
    %v967 = vld [vmem:[#allocation10 + $0x60] sm:$0xf]
    %v968 = vld [vmem:[#allocation10 + $0x64] sm:$0xf]
    %v969 = vld [vmem:[#allocation10 + $0x68] sm:$0xf]
    %v970 = vld [vmem:[#allocation10 + $0x6c] sm:$0xf]
    %v971 = vld [vmem:[#allocation10 + $0x70] sm:$0xf]
    %v972 = vld [vmem:[#allocation10 + $0x74] sm:$0xf]
    %v973 = vld [vmem:[#allocation10 + $0x78] sm:$0xf]
    %v974 = vld [vmem:[#allocation10 + $0x7c] sm:$0xf]
    %v975 = vld [vmem:[#allocation10 + $0x80] sm:$0xf]
    %v976 = vld [vmem:[#allocation10 + $0x84] sm:$0xf]
    %v977 = vld [vmem:[#allocation10 + $0x88] sm:$0xf]
    %v978 = vld [vmem:[#allocation10 + $0x8c] sm:$0xf]
    %v979 = vld [vmem:[#allocation10 + $0x90] sm:$0xf]
    %v980 = vld [vmem:[#allocation10 + $0x94] sm:$0xf]
    %v981 = vld [vmem:[#allocation10 + $0x98] sm:$0xf]
    %v982 = vld [vmem:[#allocation10 + $0x9c] sm:$0xf]
    %v983 = vld [vmem:[#allocation10 + $0xa0] sm:$0xf]
    %v984 = vld [vmem:[#allocation10 + $0xa4] sm:$0xf]
    %v985 = vld [vmem:[#allocation10 + $0xa8] sm:$0xf]
    %v986 = vld [vmem:[#allocation10 + $0xac] sm:$0xf]
    %v987 = vld [vmem:[#allocation10 + $0xb0] sm:$0xf]
    %v988 = vld [vmem:[#allocation10 + $0xb4] sm:$0xf]
    %v989 = vld [vmem:[#allocation10 + $0xb8] sm:$0xf]
    %v990 = vld [vmem:[#allocation10 + $0xbc] sm:$0xf]
    %v991 = vld [vmem:[#allocation10 + $0xc0] sm:$0xf]
    %v992 = vld [vmem:[#allocation10 + $0xc4] sm:$0xf]
    %v993 = vld [vmem:[#allocation10 + $0xc8] sm:$0xf]
    %v994 = vld [vmem:[#allocation10 + $0xcc] sm:$0xf]
    %v995 = vld [vmem:[#allocation10 + $0xd0] sm:$0xf]
    %v996 = vld [vmem:[#allocation10 + $0xd4] sm:$0xf]
    %v997 = vld [vmem:[#allocation10 + $0xd8] sm:$0xf]
    %v998 = vld [vmem:[#allocation10 + $0xdc] sm:$0xf]
    %v999 = vld [vmem:[#allocation10 + $0xe0] sm:$0xf]
    %v1000 = vld [vmem:[#allocation10 + $0xe4] sm:$0xf]
    %v1001 = vld [vmem:[#allocation10 + $0xe8] sm:$0xf]
    %v1002 = vld [vmem:[#allocation10 + $0xec] sm:$0xf]
    %v1003 = vld [vmem:[#allocation10 + $0xf0] sm:$0xf]
    %v1004 = vld [vmem:[#allocation10 + $0xf4] sm:$0xf]
    %v1005 = vld [vmem:[#allocation10 + $0xf8] sm:$0xf]
    %v1006 = vld [vmem:[#allocation10 + $0xfc] sm:$0xf]
    %v1007 = vld [vmem:[%s8] sm:$0x1]
    %v1009 = vlaneseq
    %v1010 = vshrl.u32 %v1009, 7
    %v1011 = vsub.s32 0, %v1010
    %v1012 = vrot.slane %v1007, %v1011
    %v1078 = vunpack.c.l.b16 %v943
    %v1079 = vunpack.c.l.b16 %v944
    %v1080 = vunpack.c.l.b16 %v945
    %v1081 = vunpack.c.l.b16 %v946
    %v1082 = vunpack.c.l.b16 %v947
    %v1083 = vunpack.c.l.b16 %v948
    %v1084 = vunpack.c.l.b16 %v949
    %v1085 = vunpack.c.l.b16 %v950
    %v1086 = vunpack.c.l.b16 %v951
    %v1087 = vunpack.c.l.b16 %v952
    %v1088 = vunpack.c.l.b16 %v953
    %v1089 = vunpack.c.l.b16 %v954
    %v1090 = vunpack.c.l.b16 %v955
    %v1091 = vunpack.c.l.b16 %v956
    %v1092 = vunpack.c.l.b16 %v957
    %v1093 = vunpack.c.l.b16 %v958
    %v1094 = vunpack.c.l.b16 %v959
    %v1095 = vunpack.c.l.b16 %v960
    %v1096 = vunpack.c.l.b16 %v961
    %v1097 = vunpack.c.l.b16 %v962
    %v1098 = vunpack.c.l.b16 %v963
    %v1099 = vunpack.c.l.b16 %v964
    %v1100 = vunpack.c.l.b16 %v965
    %v1101 = vunpack.c.l.b16 %v966
    %v1102 = vunpack.c.l.b16 %v967
    %v1103 = vunpack.c.l.b16 %v968
    %v1104 = vunpack.c.l.b16 %v969
    %v1105 = vunpack.c.l.b16 %v970
    %v1106 = vunpack.c.l.b16 %v971
    %v1107 = vunpack.c.l.b16 %v972
    %v1108 = vunpack.c.l.b16 %v973
    %v1109 = vunpack.c.l.b16 %v974
    %v1110 = vunpack.c.l.b16 %v975
    %v1111 = vunpack.c.l.b16 %v976
    %v1112 = vunpack.c.l.b16 %v977
    %v1113 = vunpack.c.l.b16 %v978
    %v1114 = vunpack.c.l.b16 %v979
    %v1115 = vunpack.c.l.b16 %v980
    %v1116 = vunpack.c.l.b16 %v981
    %v1117 = vunpack.c.l.b16 %v982
    %v1118 = vunpack.c.l.b16 %v983
    %v1119 = vunpack.c.l.b16 %v984
    %v1120 = vunpack.c.l.b16 %v985
    %v1121 = vunpack.c.l.b16 %v986
    %v1122 = vunpack.c.l.b16 %v987
    %v1123 = vunpack.c.l.b16 %v988
    %v1124 = vunpack.c.l.b16 %v989
    %v1125 = vunpack.c.l.b16 %v990
    %v1126 = vunpack.c.l.b16 %v991
    %v1127 = vunpack.c.l.b16 %v992
    %v1128 = vunpack.c.l.b16 %v993
    %v1129 = vunpack.c.l.b16 %v994
    %v1130 = vunpack.c.l.b16 %v995
    %v1131 = vunpack.c.l.b16 %v996
    %v1132 = vunpack.c.l.b16 %v997
    %v1133 = vunpack.c.l.b16 %v998
    %v1134 = vunpack.c.l.b16 %v999
    %v1135 = vunpack.c.l.b16 %v1000
    %v1136 = vunpack.c.l.b16 %v1001
    %v1137 = vunpack.c.l.b16 %v1002
    %v1138 = vunpack.c.l.b16 %v1003
    %v1139 = vunpack.c.l.b16 %v1004
    %v1140 = vunpack.c.l.b16 %v1005
    %v1141 = vunpack.c.l.b16 %v1006
    %v1142 = vpack.c.b16 %v1079, %v1078
    %v1143 = vpack.c.b16 %v1081, %v1080
    %v1144 = vpack.c.b16 %v1083, %v1082
    %v1145 = vpack.c.b16 %v1085, %v1084
    %v1146 = vpack.c.b16 %v1087, %v1086
    %v1147 = vpack.c.b16 %v1089, %v1088
    %v1148 = vpack.c.b16 %v1091, %v1090
    %v1149 = vpack.c.b16 %v1093, %v1092
    %v1150 = vpack.c.b16 %v1095, %v1094
    %v1151 = vpack.c.b16 %v1097, %v1096
    %v1152 = vpack.c.b16 %v1099, %v1098
    %v1153 = vpack.c.b16 %v1101, %v1100
    %v1154 = vpack.c.b16 %v1103, %v1102
    %v1155 = vpack.c.b16 %v1105, %v1104
    %v1156 = vpack.c.b16 %v1107, %v1106
    %v1157 = vpack.c.b16 %v1109, %v1108
    %v1158 = vpack.c.b16 %v1111, %v1110
    %v1159 = vpack.c.b16 %v1113, %v1112
    %v1160 = vpack.c.b16 %v1115, %v1114
    %v1161 = vpack.c.b16 %v1117, %v1116
    %v1162 = vpack.c.b16 %v1119, %v1118
    %v1163 = vpack.c.b16 %v1121, %v1120
    %v1164 = vpack.c.b16 %v1123, %v1122
    %v1165 = vpack.c.b16 %v1125, %v1124
    %v1166 = vpack.c.b16 %v1127, %v1126
    %v1167 = vpack.c.b16 %v1129, %v1128
    %v1168 = vpack.c.b16 %v1131, %v1130
    %v1169 = vpack.c.b16 %v1133, %v1132
    %v1170 = vpack.c.b16 %v1135, %v1134
    %v1171 = vpack.c.b16 %v1137, %v1136
    %v1172 = vpack.c.b16 %v1139, %v1138
    %v1173 = vpack.c.b16 %v1141, %v1140
    %1206 = vmatprep.subr.bf16.mxu0 0
    %1207 = vmatpush1.bf16.msra.mxu0 %v1142
    %1208 = vmatprep.subr.bf16.mxu0 0
    %1209 = vmatpush1.bf16.msra.mxu0 %v1143
    %1210 = vmatprep.subr.bf16.mxu0 0
    %1211 = vmatpush1.bf16.msra.mxu0 %v1144
    %1212 = vmatprep.subr.bf16.mxu0 0
    %1213 = vmatpush1.bf16.msra.mxu0 %v1145
    %1214 = vmatprep.subr.bf16.mxu0 0
    %1215 = vmatpush1.bf16.msra.mxu0 %v1146
    %1216 = vmatprep.subr.bf16.mxu0 0
    %1217 = vmatpush1.bf16.msra.mxu0 %v1147
    %1218 = vmatprep.subr.bf16.mxu0 0
    %1219 = vmatpush1.bf16.msra.mxu0 %v1148
    %1220 = vmatprep.subr.bf16.mxu0 0
    %1221 = vmatpush1.bf16.msra.mxu0 %v1149
    %1222 = vmatprep.subr.bf16.mxu0 0
    %1223 = vmatpush1.bf16.msra.mxu0 %v1150
    %1224 = vmatprep.subr.bf16.mxu0 0
    %1225 = vmatpush1.bf16.msra.mxu0 %v1151
    %1226 = vmatprep.subr.bf16.mxu0 0
    %1227 = vmatpush1.bf16.msra.mxu0 %v1152
    %1228 = vmatprep.subr.bf16.mxu0 0
    %1229 = vmatpush1.bf16.msra.mxu0 %v1153
    %1230 = vmatprep.subr.bf16.mxu0 0
    %1231 = vmatpush1.bf16.msra.mxu0 %v1154
    %1232 = vmatprep.subr.bf16.mxu0 0
    %1233 = vmatpush1.bf16.msra.mxu0 %v1155
    %1234 = vmatprep.subr.bf16.mxu0 0
    %1235 = vmatpush1.bf16.msra.mxu0 %v1156
    %1236 = vmatprep.subr.bf16.mxu0 0
    %1237 = vmatpush1.bf16.msra.mxu0 %v1157
    %1238 = vmatprep.mubr.bf16.mxu0 %v940
    %1239 = vmatmul.mubr.bf16.gmra.mrb[0].mxu0 %v939
    %v1240 = vpop.f32.mrb[0].mxu0
    %v1241 = vadd.f32 %v1012, %v1240
    %v1242 = vpop.f32.mrb[0].mxu0
    %v1243 = vpop.f32.mrb[0].mxu0
    %v1244 = vadd.f32 %v1012, %v1243
    %v1245 = vpop.f32.mrb[0].mxu0
    %1246 = vdwg.mxu0
    %1247 = vmatprep.subr.bf16.mxu0 0
    %1248 = vmatpush1.bf16.msra.mxu0 %v1158
    %1249 = vmatprep.subr.bf16.mxu0 0
    %1250 = vmatpush1.bf16.msra.mxu0 %v1159
    %1251 = vmatprep.subr.bf16.mxu0 0
    %1252 = vmatpush1.bf16.msra.mxu0 %v1160
    %1253 = vmatprep.subr.bf16.mxu0 0
    %1254 = vmatpush1.bf16.msra.mxu0 %v1161
    %1255 = vmatprep.subr.bf16.mxu0 0
    %1256 = vmatpush1.bf16.msra.mxu0 %v1162
    %1257 = vmatprep.subr.bf16.mxu0 0
    %1258 = vmatpush1.bf16.msra.mxu0 %v1163
    %1259 = vmatprep.subr.bf16.mxu0 0
    %1260 = vmatpush1.bf16.msra.mxu0 %v1164
    %1261 = vmatprep.subr.bf16.mxu0 0
    %1262 = vmatpush1.bf16.msra.mxu0 %v1165
    %1263 = vmatprep.subr.bf16.mxu0 0
    %1264 = vmatpush1.bf16.msra.mxu0 %v1166
    %1265 = vmatprep.subr.bf16.mxu0 0
    %1266 = vmatpush1.bf16.msra.mxu0 %v1167
    %1267 = vmatprep.subr.bf16.mxu0 0
    %1268 = vmatpush1.bf16.msra.mxu0 %v1168
    %1269 = vmatprep.subr.bf16.mxu0 0
    %1270 = vmatpush1.bf16.msra.mxu0 %v1169
    %1271 = vmatprep.subr.bf16.mxu0 0
    %1272 = vmatpush1.bf16.msra.mxu0 %v1170
    %1273 = vmatprep.subr.bf16.mxu0 0
    %1274 = vmatpush1.bf16.msra.mxu0 %v1171
    %1275 = vmatprep.subr.bf16.mxu0 0
    %1276 = vmatpush1.bf16.msra.mxu0 %v1172
    %1277 = vmatprep.subr.bf16.mxu0 0
    %1278 = vmatpush1.bf16.msra.mxu0 %v1173
    %1279 = vmatprep.mubr.bf16.mxu0 %v942
    %1280 = vmatmul.mubr.bf16.gmra.mrb[0].mxu0 %v941
    %v1281 = vpop.f32.mrb[0].mxu0
    %v1282 = vadd.f32 %v1241, %v1281
    %v1283 = vpop.f32.mrb[0].mxu0
    %v1284 = vpop.f32.mrb[0].mxu0
    %v1285 = vadd.f32 %v1244, %v1284
    %v1286 = vpop.f32.mrb[0].mxu0
    %1287 = vdwg.mxu0
    %v1288 = vlaneseq
    %v1289 = vand.u32 %v1288, 127
    %vm1290 = vcmp.lt.s32.totalorder %v1289, 6
    %v1291 = vsel %vm1290, %v1282, -1e+30
    %v1292 = vsel %vm1290, %v1285, -1e+30
    %1293 = vmax.xlane.f32.xlu0 %v1291
    %v1294 = vpop.xlane.xlu0 %1293
    %1295 = vmax.xlane.f32.xlu0 %v1292
    %v1296 = vpop.xlane.xlu0 %1295
    %v1297 = vsub.f32 %v1291, %v1294
    %v1298 = vsub.f32 %v1292, %v1296
    %v1299 = vmul.f32 %v1297, 1.442695
    %v1300 = vpow.pop %v1299
    %v1301 = vmul.f32 %v1298, 1.442695
    %v1302 = vpow.pop %v1301
    %1303 = vadd.xlane.f32.xlu0 %v1300
    %v1304 = vpop.xlane.xlu0 %1303
    %1305 = vadd.xlane.f32.xlu0 %v1302
    %v1306 = vpop.xlane.xlu0 %1305
    %v1307 = vrcp.pop %v1304
    %v1308 = vrcp.pop %v1306
    %v1309 = vmul.f32 %v1300, %v1307
    %v1310 = vmul.f32 %v1302, %v1308
    %v1311 = vsel %vm1290, %v1309, %v1282
    %v1312 = vsel %vm1290, %v1310, %v1285
    %1313 = vst [vmem:[#allocation11] sm:$0xff] %v1311
    %1314 = vst [vmem:[#allocation11 + $0x8] sm:$0xff] %v1312
    // Predicated region
    $region58: #{tpu_custom_call.1} parent=1 // pred_check
      _
    $region59: #{tpu_custom_call.1} parent=1 // pred_check_branch
      %1316 = sbr.rel (0) target = $region61
    $region60: #{tpu_custom_call.1} parent=1 // pred_region
      %s1318 = ssub.s32 256, 256
      %1319 = vsyncadd [#allocation4], %s1318
      %s1320 = sshll.u32 [#allocation11], 4
      %s1321 = int_to_ptr.vmem [resolvable:$true] %s1320
      %1326 = dma.vmem_to_hbm [thread:$0]  %s1321, 256, %s9, [#allocation4], 128, 128, 8
    $region61: #{tpu_custom_call.1} parent=1 // pred_fallthru
      _
    // Predicated region
    $region62: #{tpu_custom_call.1} parent=1 // pred_check
      _
    $region63: #{tpu_custom_call.1} parent=1 // pred_check_branch
      %1328 = sbr.rel (0) target = $region65
    $region64: #{tpu_custom_call.1} parent=1 // pred_region
      %1329 = dma.done [#allocation4], 256
    $region65: #{tpu_custom_call.1} parent=1 // pred_fallthru
      _
    %1330 = vsyncpa [#allocation3], 1
    %1331 = vsyncpa [#allocation6], 1
    %1332 = vsyncpa [#allocation9], 1
    %1333 = vsyncpa [#allocation4], 1

</llo_original>
